<compile_context>
chip_gen: v7x
topology: tpu7x:2x2x1
jax: 0.10.0
libtpu: 0.0.40
codegen_flags: <defaults>
</compile_context>

<pallas_src>
import functools
import math

import jax
import jax.numpy as jnp
from jax.experimental import pallas as pl
from jax.experimental.pallas import tpu as pltpu


def _ctm_block_kernel(x_ref, w_ref, bias_ref, base_ref, o_ref, *, post_scale: float):
    # x_ref:    (MB, I)   MB = TS*batch rows of time-major input (TS time steps)
    # w_ref:    (I, H)    input weights (transposed; c folded in when c > 0)
    # bias_ref: (MB, H)   loop-invariant fused bias  c*(b_in + h0 @ W_h^T + b_h)
    # base_ref: (MB, H)   loop-invariant blend term  h0 * (1 - c)
    # o_ref:    (MB, H)   output rows for these TS time steps
    pre = jnp.dot(x_ref[...], w_ref[...], preferred_element_type=jnp.float32)
    act = jnp.maximum(pre + bias_ref[...], 0.0)
    if post_scale != 1.0:                 # only when c <= 0 (fold not applicable)
        act = act * post_scale
    o_ref[...] = (base_ref[...] + act).astype(o_ref.dtype)


def continuous_time_model_forward(x, w_in, b_in, w_h, b_h, *, tau: float,
                                  dt: float, hidden=None, time_block=None):
    """x: (seq, batch, I) -> (output (seq, batch, H), hidden (batch, H))."""
    seq, batch, input_size = x.shape
    hidden_size = w_in.shape[0]
    constant = float(dt) / float(tau)
    out_dtype = x.dtype

    if hidden is None:
        hidden = jnp.zeros((batch, hidden_size), dtype=x.dtype)

    f32 = jnp.float32
    h0 = hidden.astype(f32)

    # ---- loop-invariant hoists (hidden is never updated in the reference) ----
    bias_fused = (b_in.astype(f32)[None, :]
                  + jnp.dot(h0, jnp.transpose(w_h).astype(f32))
                  + b_h.astype(f32)[None, :])                        # (B, H)
    base = h0 * (1.0 - constant)                                     # (B, H)
    win_t = jnp.transpose(w_in).astype(f32)                          # (I, H)

    # Fold c into the matmul path: relu(c*z) = c*relu(z) for c > 0.
    if constant > 0.0:
        win_t = win_t * constant
        bias_fused = bias_fused * constant
        post_scale = 1.0
    else:
        post_scale = constant

    win_t = win_t.astype(x.dtype)      # MXU-native operand dtype (f32 or bf16)

    # ---- time-block selection (TS steps -> TS*batch matmul rows) ----
    rows_total = seq * batch
    step = 8 // math.gcd(batch, 8)     # smallest TS with (TS*batch) % 8 == 0

    TARGET_ROWS = 2048                 # large blocks: amortize per-step overhead
    TILE_BUDGET_BYTES = 12 * 1024 * 1024
    VMEM_LIMIT_BYTES = 32 * 1024 * 1024  # fits v5e/v6e/v7x scoped VMEM

    x_item = jnp.dtype(x.dtype).itemsize
    out_item = jnp.dtype(out_dtype).itemsize
    w_bytes = 2 * input_size * hidden_size * jnp.dtype(win_t.dtype).itemsize
    per_row_bytes = (2 * input_size * x_item        # x, double buffered
                     + 4 * hidden_size * 4          # bias+base (2 arrays x 2 bufs, f32)
                     + 2 * hidden_size * out_item   # output, double buffered
                     + 2 * hidden_size * 4)         # f32 matmul/relu intermediates
    ts_budget = max(step, (TILE_BUDGET_BYTES - w_bytes) // max(1, per_row_bytes * batch))

    if time_block is not None:
        ts = max(1, min(int(time_block), seq))
    else:
        ts = min(seq, max(1, TARGET_ROWS // batch), int(ts_budget))

    if ts >= seq:
        ts = seq                                   # single full-extent block (always legal)
    else:
        ts = min(seq, max(step, (ts // step) * step))  # keep (TS*batch) % 8 == 0

    if time_block is None and ts >= seq and seq > 1:
        # keep >= 2 grid blocks so v7x can use both TensorCores
        half = (((seq + 1) // 2) // step) * step
        if 0 < half < seq:
            ts = half

    mb = ts * batch
    num_blocks = pl.cdiv(rows_total, mb)           # ragged edge handled by Pallas masking

    # Flatten time-major input to 2-D rows (a free leading-dim merge, no copy).
    x2 = x.reshape(rows_total, input_size)

    # Tile the small (B, H) invariants over TS so each block sees a full (MB, H)
    # slab (row r within a block is batch index r % batch).  Constant index_map
    # -> DMA'd to VMEM once; footprint is charged to the ts budget above.
    bias_tile = jnp.tile(bias_fused, (ts, 1))      # (MB, H)
    base_tile = jnp.tile(base, (ts, 1))            # (MB, H)

    kernel = functools.partial(_ctm_block_kernel, post_scale=post_scale)

    out2 = pl.pallas_call(
        kernel,
        out_shape=jax.ShapeDtypeStruct((rows_total, hidden_size), out_dtype),
        grid_spec=pltpu.PrefetchScalarGridSpec(
            num_scalar_prefetch=0,
            grid=(num_blocks,),
            in_specs=[
                pl.BlockSpec((mb, input_size), lambda t: (t, 0)),           # streamed x rows
                pl.BlockSpec((input_size, hidden_size), lambda t: (0, 0)),  # constant weights
                pl.BlockSpec((mb, hidden_size), lambda t: (0, 0)),          # constant bias
                pl.BlockSpec((mb, hidden_size), lambda t: (0, 0)),          # constant base
            ],
            out_specs=pl.BlockSpec((mb, hidden_size), lambda t: (t, 0)),
        ),
        compiler_params=pltpu.CompilerParams(
            dimension_semantics=("parallel",),     # no carried state across blocks
            vmem_limit_bytes=VMEM_LIMIT_BYTES,
        ),
    )(x2, win_t, bias_tile, base_tile)

    # Free leading-dim split; no padding/slicing copies.
    out = out2.reshape(seq, batch, hidden_size)
    # The reference forward() returns the *initial* hidden (it is never updated).
    return out, hidden


def _reference_forward(x, w_in, b_in, w_h, b_h, tau, dt, hidden=None):
    """Pure-JAX replica of the PyTorch forward, for verification."""
    seq, batch, _ = x.shape
    hidden_size = w_in.shape[0]
    c = dt / tau
    if hidden is None:
        hidden = jnp.zeros((batch, hidden_size), dtype=x.dtype)
    outs = []
    for t in range(seq):
        pre = x[t] @ w_in.T + b_in + hidden @ w_h.T + b_h
        outs.append(hidden * (1.0 - c) + c * jnp.maximum(pre, 0.0))
    return jnp.stack(outs, axis=0), hidden


if __name__ == "__main__":
    # Small, module-consistent shapes: (seq, batch, input_size), hidden_size.
    seq, batch, input_size, hidden_size = 8, 4, 16, 32
    tau, dt = 10.0, 1.0

    key = jax.random.PRNGKey(0)
    k_x, k_wi, k_bi, k_wh, k_bh, k_h = jax.random.split(key, 6)

    x = jax.random.normal(k_x, (seq, batch, input_size), dtype=jnp.float32)

    # Deterministic parameter init (nn.Linear-style uniform bounds).
    bound_in = 1.0 / float(input_size) ** 0.5
    bound_h = 1.0 / float(hidden_size) ** 0.5
    w_in = jax.random.uniform(k_wi, (hidden_size, input_size), jnp.float32,
                              -bound_in, bound_in)
    b_in = jax.random.uniform(k_bi, (hidden_size,), jnp.float32,
                              -bound_in, bound_in)
    w_h = jax.random.uniform(k_wh, (hidden_size, hidden_size), jnp.float32,
                             -bound_h, bound_h)
    b_h = jax.random.uniform(k_bh, (hidden_size,), jnp.float32,
                             -bound_h, bound_h)

    # Case 1: default hidden=None (zeros), the module's default path.
    out, h_final = continuous_time_model_forward(
        x, w_in, b_in, w_h, b_h, tau=tau, dt=dt)
    jax.block_until_ready(out)
    jax.block_until_ready(h_final)
    ref_out, ref_h = _reference_forward(x, w_in, b_in, w_h, b_h, tau, dt)
    assert out.shape == (seq, batch, hidden_size)
    assert h_final.shape == (batch, hidden_size)
    assert jnp.allclose(out, ref_out, atol=1e-5, rtol=1e-5)
    assert jnp.allclose(h_final, ref_h, atol=1e-5, rtol=1e-5)

    # Case 2: explicit non-zero initial hidden (exercises per-row invariants).
    h0 = jax.random.normal(k_h, (batch, hidden_size), dtype=jnp.float32)
    out2, h2 = continuous_time_model_forward(
        x, w_in, b_in, w_h, b_h, tau=tau, dt=dt, hidden=h0)
    jax.block_until_ready(out2)
    ref_out2, ref_h2 = _reference_forward(x, w_in, b_in, w_h, b_h, tau, dt, hidden=h0)
    assert jnp.allclose(out2, ref_out2, atol=1e-5, rtol=1e-5)
    assert jnp.allclose(h2, ref_h2, atol=1e-5, rtol=1e-5)

    print("KERNEL_OK")
</pallas_src>

<mosaic_0001>
module attributes {stable_mosaic.version = 11 : i64} {
  func.func @_ctm_block_kernel(%arg0: i32, %arg1: memref<16x16xf32, #tpu.memory_space<vmem>>, %arg2: memref<16x32xf32, #tpu.memory_space<vmem>>, %arg3: memref<16x32xf32, #tpu.memory_space<vmem>>, %arg4: memref<16x32xf32, #tpu.memory_space<vmem>>, %arg5: memref<16x32xf32, #tpu.memory_space<vmem>>) attributes {dimension_semantics = [#tpu.dimension_semantics<parallel>], iteration_bounds = array<i64: 2>, scalar_prefetch = 0 : i64, scratch_operands = 0 : i64, tpu.core_type = #tpu.core_type<tc>, window_params = [{transform_indices = @transform_0, window_bounds = array<i64: 16, 16>}, {pipeline_mode = #tpu.pipeline_mode<synchronous>, transform_indices = @transform_1, window_bounds = array<i64: 16, 32>}, {pipeline_mode = #tpu.pipeline_mode<synchronous>, transform_indices = @transform_2, window_bounds = array<i64: 16, 32>}, {pipeline_mode = #tpu.pipeline_mode<synchronous>, transform_indices = @transform_3, window_bounds = array<i64: 16, 32>}, {transform_indices = @transform_4, window_bounds = array<i64: 16, 32>}]} {
    %c0 = arith.constant 0 : index
    %c0_0 = arith.constant 0 : index
    %0 = vector.load %arg1[%c0, %c0_0] : memref<16x16xf32, #tpu.memory_space<vmem>>, vector<16x16xf32>
    %c0_1 = arith.constant 0 : index
    %c0_2 = arith.constant 0 : index
    %1 = vector.load %arg2[%c0_1, %c0_2] : memref<16x32xf32, #tpu.memory_space<vmem>>, vector<16x32xf32>
    %cst = arith.constant dense<0.000000e+00> : vector<16x32xf32>
    %2 = tpu.matmul %0, %1, %cst {dimension_numbers = #tpu.dot_dimension_numbers<[1], [0], [0], [1], [0, 0, 1, 1], [], []>} : vector<16x16xf32>, vector<16x32xf32>, vector<16x32xf32> -> vector<16x32xf32>
    %c0_3 = arith.constant 0 : index
    %c0_4 = arith.constant 0 : index
    %3 = vector.load %arg3[%c0_3, %c0_4] : memref<16x32xf32, #tpu.memory_space<vmem>>, vector<16x32xf32>
    %4 = arith.addf %2, %3 : vector<16x32xf32>
    %cst_5 = arith.constant 0.000000e+00 : f32
    %5 = vector.broadcast %cst_5 : f32 to vector<16x32xf32>
    %6 = arith.maximumf %4, %5 : vector<16x32xf32>
    %c0_6 = arith.constant 0 : index
    %c0_7 = arith.constant 0 : index
    %7 = vector.load %arg4[%c0_6, %c0_7] : memref<16x32xf32, #tpu.memory_space<vmem>>, vector<16x32xf32>
    %8 = arith.addf %7, %6 : vector<16x32xf32>
    %c0_8 = arith.constant 0 : index
    %c0_9 = arith.constant 0 : index
    %9 = vector.load %arg5[%c0_8, %c0_9] : memref<16x32xf32, #tpu.memory_space<vmem>>, vector<16x32xf32>
    tpu.vector_store %arg5[%c0_8, %c0_9], %8 {strides = array<i32>} : memref<16x32xf32, #tpu.memory_space<vmem>>, vector<16x32xf32>,
    return
  }
  func.func @transform_0(%arg0: i32) -> (i32, i32) {
    %c0_i32 = arith.constant 0 : i32
    %c0_i32_0 = arith.constant 0 : i32
    return %arg0, %c0_i32 : i32, i32
  }
  func.func @transform_1(%arg0: i32) -> (i32, i32) {
    %c0_i32 = arith.constant 0 : i32
    %c0_i32_0 = arith.constant 0 : i32
    %c0_i32_1 = arith.constant 0 : i32
    return %c0_i32, %c0_i32_0 : i32, i32
  }
  func.func @transform_2(%arg0: i32) -> (i32, i32) {
    %c0_i32 = arith.constant 0 : i32
    %c0_i32_0 = arith.constant 0 : i32
    %c0_i32_1 = arith.constant 0 : i32
    return %c0_i32, %c0_i32_0 : i32, i32
  }
  func.func @transform_3(%arg0: i32) -> (i32, i32) {
    %c0_i32 = arith.constant 0 : i32
    %c0_i32_0 = arith.constant 0 : i32
    %c0_i32_1 = arith.constant 0 : i32
    return %c0_i32, %c0_i32_0 : i32, i32
  }
  func.func @transform_4(%arg0: i32) -> (i32, i32) {
    %c0_i32 = arith.constant 0 : i32
    %c0_i32_0 = arith.constant 0 : i32
    return %arg0, %c0_i32 : i32, i32
  }
}

</mosaic_0001>

<llo_original>
// kernel: tpu_custom_call.1
$region0: #{tpu_custom_call.1}
  #allocation0 [shape = 'u32[]', space=smem, size = 0x4, offset = 0x4, fixed_abs, tag = 'smem constant byte address 0x4 - core index']
  #allocation1 [shape = 'u32[144,128]{1,0:T(1,128)}', space=vmem, size = 0x12000, scoped, tag = 'internal scratch']
  %s0 = inlined_call_operand.vmem [shape: f32[32,16], index: 0, kind: input, shape index: {}]
  %s1 = inlined_call_operand.vmem [shape: f32[16,32], index: 1, kind: input, shape index: {}]
  %s2 = inlined_call_operand.vmem [shape: f32[16,32], index: 2, kind: input, shape index: {}]
  %s3 = inlined_call_operand.vmem [shape: f32[16,32], index: 3, kind: input, shape index: {}]
  %s4 = inlined_call_operand.hbm [shape: f32[32,32], index: 4, kind: output, shape index: {}]
  %s5 = sld [smem:[#allocation0]]
  $region49: #{tpu_custom_call.1} parent=0
    _
  %s7 = ssub.s32 1, %s5
  %s8 = scalar_select 0, %s7, %s5
  $region1: #{tpu_custom_call.1} parent=0
    #allocation2 [shape = 'u8[16384]{0}', space=vmem, size = 0x4000, scoped, tag = 'output window, operand 0']
    #allocation3 [shape = 's32[2]{0}', space=sflag, size = 0x8, scoped, tag = 'scoped memory for tpu_custom_call.1']
    %9 = vsyncpa [#allocation3], 0
    %s10 = scalar_lea.sflag [#allocation3], 1
    %11 = vsyncpa %s10, 0
    loop: start=0, step=1, limit=4
    $region2: #{tpu_custom_call.1} parent=1 // loop_pre_header
      _
    $region3: #{tpu_custom_call.1} parent=1 // loop_header
      %s13 = sphi 0, %s17
      %p14 = scmp.ge.s32.totalorder %s13, 4
      %s23 = sphi 0, %s25
      %s26 = sphi 0, %s23
      %s27 = sphi 0, %s26
      %s43 = sphi 0, %s27
      %s47 = sphi 0, %s47
      %s49 = sphi 0, %s47
      %s50 = sphi 0, %s49
      %s64 = sphi 0, %s50
      %s68 = sphi 0, %s68
      %s70 = sphi 0, %s68
      %s71 = sphi 0, %s70
      %s85 = sphi 0, %s71
      %s89 = sphi 0, %s89
      %s91 = sphi 0, %s89
      %s92 = sphi 0, %s91
      %s106 = sphi 0, %s92
      %s112 = sphi 0, %s114
      %s115 = sphi 0, %s112
      %s116 = sphi 0, %s115
      %s132 = sphi 0, %s116
    $region4: #{tpu_custom_call.1} parent=1 // loop_header_branch
      %16 = sbr.rel (%p14) target = $region8
    $region5: #{tpu_custom_call.1} parent=1 // loop_body
      %s18 = ssub.s32 %s13, 1
      %s19 = ssub.s32 %s13, 2
      %s20 = sadd.s32 %s13, 1
      %s21 = ssub.s32 %s13, %s20
      %p22 = scmp.eq.s32.totalorder %s21, 0
      %s24 = sadd.s32 %s23, 1
      %s25 = scalar_select %p22, %s23, %s24
      %p28 = pneg %p22
      %p29 = scmp.eq.s32.totalorder %s13, 1
      %p30 = por %p28, %p29
      %p31 = scmp.ne.s32.totalorder %s23, %s26
      %p32 = scmp.eq.s32.totalorder %s13, 0
      %p33 = por %p31, %p32
      %p34 = scmp.ne.s32.totalorder %s23, %s26
      %p35 = scmp.eq.s32.totalorder %s18, 1
      %p36 = por %p34, %p35
      %p37 = scmp.ne.s32.totalorder %s26, %s27
      %p38 = scmp.eq.s32.totalorder %s18, 0
      %p39 = por %p37, %p38
      %p40 = scmp.ne.s32.totalorder %s26, %s27
      %p41 = scmp.eq.s32.totalorder %s19, 1
      %p42 = por %p40, %p41
      %p44 = scmp.ne.s32.totalorder %s27, %s43
      %p45 = scmp.eq.s32.totalorder %s19, 0
      %p46 = por %p44, %p45
      %s48 = sadd.s32 %s47, 1
      %p51 = scmp.eq.s32.totalorder %s13, 1
      %p52 = scmp.ne.s32.totalorder %s47, %s49
      %p53 = scmp.eq.s32.totalorder %s13, 0
      %p54 = por %p52, %p53
      %p55 = scmp.ne.s32.totalorder %s47, %s49
      %p56 = scmp.eq.s32.totalorder %s18, 1
      %p57 = por %p55, %p56
      %p58 = scmp.ne.s32.totalorder %s49, %s50
      %p59 = scmp.eq.s32.totalorder %s18, 0
      %p60 = por %p58, %p59
      %p61 = scmp.ne.s32.totalorder %s49, %s50
      %p62 = scmp.eq.s32.totalorder %s19, 1
      %p63 = por %p61, %p62
      %p65 = scmp.ne.s32.totalorder %s50, %s64
      %p66 = scmp.eq.s32.totalorder %s19, 0
      %p67 = por %p65, %p66
      %s69 = sadd.s32 %s68, 1
      %p72 = scmp.eq.s32.totalorder %s13, 1
      %p73 = scmp.ne.s32.totalorder %s68, %s70
      %p74 = scmp.eq.s32.totalorder %s13, 0
      %p75 = por %p73, %p74
      %p76 = scmp.ne.s32.totalorder %s68, %s70
      %p77 = scmp.eq.s32.totalorder %s18, 1
      %p78 = por %p76, %p77
      %p79 = scmp.ne.s32.totalorder %s70, %s71
      %p80 = scmp.eq.s32.totalorder %s18, 0
      %p81 = por %p79, %p80
      %p82 = scmp.ne.s32.totalorder %s70, %s71
      %p83 = scmp.eq.s32.totalorder %s19, 1
      %p84 = por %p82, %p83
      %p86 = scmp.ne.s32.totalorder %s71, %s85
      %p87 = scmp.eq.s32.totalorder %s19, 0
      %p88 = por %p86, %p87
      %s90 = sadd.s32 %s89, 1
      %p93 = scmp.eq.s32.totalorder %s13, 1
      %p94 = scmp.ne.s32.totalorder %s89, %s91
      %p95 = scmp.eq.s32.totalorder %s13, 0
      %p96 = por %p94, %p95
      %p97 = scmp.ne.s32.totalorder %s89, %s91
      %p98 = scmp.eq.s32.totalorder %s18, 1
      %p99 = por %p97, %p98
      %p100 = scmp.ne.s32.totalorder %s91, %s92
      %p101 = scmp.eq.s32.totalorder %s18, 0
      %p102 = por %p100, %p101
      %p103 = scmp.ne.s32.totalorder %s91, %s92
      %p104 = scmp.eq.s32.totalorder %s19, 1
      %p105 = por %p103, %p104
      %p107 = scmp.ne.s32.totalorder %s92, %s106
      %p108 = scmp.eq.s32.totalorder %s19, 0
      %p109 = por %p107, %p108
      %s110 = ssub.s32 %s13, %s20
      %p111 = scmp.eq.s32.totalorder %s110, 0
      %s113 = sadd.s32 %s112, 1
      %s114 = scalar_select %p111, %s112, %s113
      %p117 = pneg %p111
      %p118 = scmp.eq.s32.totalorder %s13, 1
      %p119 = por %p117, %p118
      %p120 = scmp.ne.s32.totalorder %s112, %s115
      %p121 = scmp.eq.s32.totalorder %s13, 0
      %p122 = por %p120, %p121
      %p123 = scmp.ne.s32.totalorder %s112, %s115
      %p124 = scmp.eq.s32.totalorder %s18, 1
      %p125 = por %p123, %p124
      %p126 = scmp.ne.s32.totalorder %s115, %s116
      %p127 = scmp.eq.s32.totalorder %s18, 0
      %p128 = por %p126, %p127
      %p129 = scmp.ne.s32.totalorder %s115, %s116
      %p130 = scmp.eq.s32.totalorder %s19, 1
      %p131 = por %p129, %p130
      %p133 = scmp.ne.s32.totalorder %s116, %s132
      %p134 = scmp.eq.s32.totalorder %s19, 0
      %p135 = por %p133, %p134
      %p136 = scmp.le.s32.totalorder 1, %s13
      %p137 = scmp.lt.s32.totalorder %s13, 3
      %p138 = pnand %p136, %p137
      %p139 = pneg %p138
      // Predicated region
      $region9: #{tpu_custom_call.1} parent=5 // pred_check
        _
      $region10: #{tpu_custom_call.1} parent=5 // pred_check_branch
        %141 = sbr.rel (%p138) target = $region12
      $region11: #{tpu_custom_call.1} parent=5 // pred_region
        %s142 = ssub.s32 %s13, 1
        // Predicated region
        $region13: #{tpu_custom_call.1} parent=11 // pred_check
          %p143 = pneg %p60
        $region14: #{tpu_custom_call.1} parent=11 // pred_check_branch
          %145 = sbr.rel (%p143) target = $region16
        $region15: #{tpu_custom_call.1} parent=11 // pred_region
          _
        $region16: #{tpu_custom_call.1} parent=11 // pred_fallthru
          _
        // Predicated region
        $region17: #{tpu_custom_call.1} parent=11 // pred_check
          %p146 = pneg %p81
        $region18: #{tpu_custom_call.1} parent=11 // pred_check_branch
          %148 = sbr.rel (%p146) target = $region20
        $region19: #{tpu_custom_call.1} parent=11 // pred_region
          _
        $region20: #{tpu_custom_call.1} parent=11 // pred_fallthru
          _
        // Predicated region
        $region21: #{tpu_custom_call.1} parent=11 // pred_check
          %p149 = pneg %p102
        $region22: #{tpu_custom_call.1} parent=11 // pred_check_branch
          %151 = sbr.rel (%p149) target = $region24
        $region23: #{tpu_custom_call.1} parent=11 // pred_region
          _
        $region24: #{tpu_custom_call.1} parent=11 // pred_fallthru
          _
      $region12: #{tpu_custom_call.1} parent=5 // pred_fallthru
        _
      %p152 = scmp.lt.s32.totalorder %s13, 2
      // Predicated region
      $region25: #{tpu_custom_call.1} parent=5 // pred_check
        %p153 = pneg %p152
      $region26: #{tpu_custom_call.1} parent=5 // pred_check_branch
        %155 = sbr.rel (%p153) target = $region28
      $region27: #{tpu_custom_call.1} parent=5 // pred_region
        // Predicated region
        $region29: #{tpu_custom_call.1} parent=27 // pred_check
          %p156 = pneg %p33
        $region30: #{tpu_custom_call.1} parent=27 // pred_check_branch
          %158 = sbr.rel (%p156) target = $region32
        $region31: #{tpu_custom_call.1} parent=27 // pred_region
          %s159 = smul.u32 2, %s13
          %p160 = scmp.lt.s32.totalorder %s159, 3
          %s161 = scalar_select %p160, %s159, 3
          %s162 = smul.addr %s161, 8
          %s163 = scalar_lea.vmem %s0, %s162
          %s164 = smul.u32 2, %s13
        $region32: #{tpu_custom_call.1} parent=27 // pred_fallthru
          _
      $region28: #{tpu_custom_call.1} parent=5 // pred_fallthru
        _
      %p165 = scmp.le.s32.totalorder 1, %s13
      %p166 = scmp.lt.s32.totalorder %s13, 3
      %p167 = pnand %p165, %p166
      %p168 = pneg %p167
      // Predicated region
      $region33: #{tpu_custom_call.1} parent=5 // pred_check
        _
      $region34: #{tpu_custom_call.1} parent=5 // pred_check_branch
        %170 = sbr.rel (%p167) target = $region36
      $region35: #{tpu_custom_call.1} parent=5 // pred_region
        %s171 = ssub.s32 %s13, 1
        %s172 = smul.u32 2, %s18
        %p173 = scmp.lt.s32.totalorder %s172, 3
        %s174 = scalar_select %p173, %s172, 3
        %s175 = smul.addr %s174, 8
        %s176 = scalar_lea.vmem %s0, %s175
        %p177 = pneg %p39
        %p178 = pneg %p36
        %p179 = pneg %p60
        %p180 = pneg %p57
        %p181 = pneg %p81
        %p182 = pneg %p78
        %p183 = pneg %p102
        %p184 = pneg %p99
        %p185 = pneg %p128
        %p186 = pneg %p125
        %s187 = sand.u32 %s115, 1
        %s188 = scalar_lea.sflag [#allocation3], %s187
        %s189 = sand.u32 %s115, 1
        %s190 = smul.addr %s189, 16
        %s191 = scalar_lea.vmem [#allocation2], %s190
        %s192 = smul.u32 2, %s18
        %p193 = scmp.lt.s32.totalorder %s192, 3
        %s194 = scalar_select %p193, %s192, 3
        %s195 = smul.addr %s194, 8
        %s196 = scalar_lea.vmem %s0, %s195
        %s197 = smul.u32 2, %s18
        %s198 = smul.u32 2, %s18
        %v199 = vld [vmem:[%s196] sm:$0xff]
        %v200 = vld [vmem:[%s196 + $0x8] sm:$0xff]
        %v201 = vld [vmem:[%s1] sm:$0xff]
        %v202 = vld [vmem:[%s1 + $0x8] sm:$0xff]
        %v203 = vld [vmem:[%s2] sm:$0xff]
        %v204 = vld [vmem:[%s2 + $0x8] sm:$0xff]
        %vm205 = vcmask 130048
        %v207 = vsel %vm205, %v199, 0
        %v210 = vsel %vm205, %v200, 0
        %212 = vmatprep.subr.mxu0 0.0
        %213 = vmatpush1.msra.mxu0 %v201
        %214 = vmatprep.subr.mxu0 0.0
        %215 = vmatpush1.msra.mxu0 %v202
        %216 = vmatprep.subr.mxu0 0.0
        %217 = vmatpush1.msra.mxu0 0.0
        %218 = vmatprep.subr.mxu0 0.0
        %219 = vmatpush1.msra.mxu0 0.0
        %220 = vmatprep.subr.mxu0 0.0
        %221 = vmatpush1.msra.mxu0 0.0
        %222 = vmatprep.subr.mxu0 0.0
        %223 = vmatpush1.msra.mxu0 0.0
        %224 = vmatprep.subr.mxu0 0.0
        %225 = vmatpush1.msra.mxu0 0.0
        %226 = vmatprep.subr.mxu0 0.0
        %227 = vmatpush1.msra.mxu0 0.0
        %228 = vmatprep.subr.mxu0 0.0
        %229 = vmatpush1.msra.mxu0 0.0
        %230 = vmatprep.subr.mxu0 0.0
        %231 = vmatpush1.msra.mxu0 0.0
        %232 = vmatprep.subr.mxu0 0.0
        %233 = vmatpush1.msra.mxu0 0.0
        %234 = vmatprep.subr.mxu0 0.0
        %235 = vmatpush1.msra.mxu0 0.0
        %236 = vmatprep.subr.mxu0 0.0
        %237 = vmatpush1.msra.mxu0 0.0
        %238 = vmatprep.subr.mxu0 0.0
        %239 = vmatpush1.msra.mxu0 0.0
        %240 = vmatprep.subr.mxu0 0.0
        %241 = vmatpush1.msra.mxu0 0.0
        %242 = vmatprep.subr.mxu0 0.0
        %243 = vmatpush1.msra.mxu0 0.0
        %244 = vmatprep.subr.mxu0 0.0
        %245 = vmatpush1.msra.mxu0 0.0
        %246 = vmatprep.subr.mxu0 0.0
        %247 = vmatpush1.msra.mxu0 0.0
        %248 = vmatprep.subr.mxu0 0.0
        %249 = vmatpush1.msra.mxu0 0.0
        %250 = vmatprep.subr.mxu0 0.0
        %251 = vmatpush1.msra.mxu0 0.0
        %252 = vmatprep.subr.mxu0 0.0
        %253 = vmatpush1.msra.mxu0 0.0
        %254 = vmatprep.subr.mxu0 0.0
        %255 = vmatpush1.msra.mxu0 0.0
        %256 = vmatprep.subr.mxu0 0.0
        %257 = vmatpush1.msra.mxu0 0.0
        %258 = vmatprep.subr.mxu0 0.0
        %259 = vmatpush1.msra.mxu0 0.0
        %260 = vmatprep.subr.mxu0 0.0
        %261 = vmatpush1.msra.mxu0 0.0
        %262 = vmatprep.subr.mxu0 0.0
        %263 = vmatpush1.msra.mxu0 0.0
        %264 = vmatprep.subr.mxu0 0.0
        %265 = vmatpush1.msra.mxu0 0.0
        %266 = vmatprep.subr.mxu0 0.0
        %267 = vmatpush1.msra.mxu0 0.0
        %268 = vmatprep.subr.mxu0 0.0
        %269 = vmatpush1.msra.mxu0 0.0
        %270 = vmatprep.subr.mxu0 0.0
        %271 = vmatpush1.msra.mxu0 0.0
        %272 = vmatprep.subr.mxu0 0.0
        %273 = vmatpush1.msra.mxu0 0.0
        %274 = vmatprep.subr.mxu0 0.0
        %275 = vmatpush1.msra.mxu0 0.0
        %276 = vmatprep.mubr.f32.mxu0 0.0
        %277 = vmatmul.mubr.f32.gmra.mrb[0].mxu0 %v207
        %v278 = vpop.f32.mrb[0].mxu0
        %v279 = vadd.f32 %v203, %v278
        %v280 = vpop.f32.mrb[0].mxu0
        %281 = vmatprep.mubr.f32.mxu0 0.0
        %282 = vmatmul.mubr.f32.gmra.mrb[0].mxu0 %v210
        %v283 = vpop.f32.mrb[0].mxu0
        %v284 = vadd.f32 %v204, %v283
        %v285 = vpop.f32.mrb[0].mxu0
        %286 = vdwg.mxu0
        %v287 = vmax.f32 %v279, 0.0
        %v288 = vmax.f32 %v284, 0.0
        %v289 = vld [vmem:[%s3] sm:$0xff]
        %v290 = vld [vmem:[%s3 + $0x8] sm:$0xff]
        %v291 = vadd.f32 %v289, %v287
        %v292 = vadd.f32 %v290, %v288
        %vm293 = vcmask 261120
        %294 = vst.msk [vmem:[%s191] sm:$0xff] %vm293, %v291
        %295 = vst.msk [vmem:[%s191 + $0x8] sm:$0xff] %vm293, %v292
        %s296 = sand.u32 %s115, 1
        %s297 = scalar_lea.sflag [#allocation3], %s296
        %s298 = sand.u32 %s115, 1
        %s299 = smul.addr %s298, 16
        %s300 = scalar_lea.vmem [#allocation2], %s299
        // Predicated region
        $region37: #{tpu_custom_call.1} parent=35 // pred_check
          %p301 = pneg %p125
        $region38: #{tpu_custom_call.1} parent=35 // pred_check_branch
          %303 = sbr.rel (%p301) target = $region40
        $region39: #{tpu_custom_call.1} parent=35 // pred_region
          %s304 = smul.u32 2, %s18
          %s306 = ssub.s32 256, 256
          %307 = vsyncadd %s297, %s306
          %s308 = smul.addr %s304, 128
          %s309 = scalar_lea.hbm %s4, %s308
          %s310 = sshll.u32 %s300, 4
          %s311 = int_to_ptr.vmem [resolvable:$true] %s310
          %316 = dma.vmem_to_hbm [thread:$0]  %s311, 256, %s309, %s297, 128, 128, 8
        $region40: #{tpu_custom_call.1} parent=35 // pred_fallthru
          _
      $region36: #{tpu_custom_call.1} parent=5 // pred_fallthru
        _
      %p317 = scmp.le.s32.totalorder 2, %s13
      // Predicated region
      $region41: #{tpu_custom_call.1} parent=5 // pred_check
        %p318 = pneg %p317
      $region42: #{tpu_custom_call.1} parent=5 // pred_check_branch
        %320 = sbr.rel (%p318) target = $region44
      $region43: #{tpu_custom_call.1} parent=5 // pred_region
        %s321 = ssub.s32 %s13, 2
        // Predicated region
        $region45: #{tpu_custom_call.1} parent=43 // pred_check
          %p322 = pneg %p131
        $region46: #{tpu_custom_call.1} parent=43 // pred_check_branch
          %324 = sbr.rel (%p322) target = $region48
        $region47: #{tpu_custom_call.1} parent=43 // pred_region
          %s325 = sand.u32 %s116, 1
          %s326 = scalar_lea.sflag [#allocation3], %s325
          %s327 = sand.u32 %s116, 1
          %s328 = smul.addr %s327, 16
          %s329 = scalar_lea.vmem [#allocation2], %s328
          %330 = dma.done %s326, 256
        $region48: #{tpu_custom_call.1} parent=43 // pred_fallthru
          _
      $region44: #{tpu_custom_call.1} parent=5 // pred_fallthru
        _
    $region6: #{tpu_custom_call.1} parent=1 // loop_footer
      %s17 = sadd.s32 1, %s13
    $region7: #{tpu_custom_call.1} parent=1 // loop_footer_branch
      %12 = sbr.rel target = $region3
    $region8: #{tpu_custom_call.1} parent=1 // loop_exit
      _
    %331 = vsyncpa [#allocation3], 1
    %s332 = scalar_lea.sflag [#allocation3], 1
    %333 = vsyncpa %s332, 1

</llo_original>
